<compile_context>
chip_gen: v6e
topology: v6e:2x2x1
jax: 0.10.0
libtpu: 0.0.40
codegen_flags: <defaults>
</compile_context>

<pallas_src>
import functools

import jax
import jax.numpy as jnp
from jax.experimental import pallas as pl
from jax.experimental.pallas import tpu as pltpu


# ------------------------------- kernel --------------------------------------

def _connector_kernel(x_ref, w1_ref, b1_ref, w2_ref, b2_ref, w3_ref, b3_ref,
                      o_ref, h_ref, *, k):
    """Fused linear1+ReLU -> AvgPool1d(k,k) -> Linear -> ReLU -> Linear.

    x_ref  : (1, ts, in_pad)      activation tile (f32 or bf16)
    w*_ref : VMEM-resident packed weights (bf16) / biases (f32, (1, out_pad))
    o_ref  : (1, ts // k, out_pad) output tile (f32)
    h_ref  : (ts, out_pad) f32 scratch holding the pre-pool activations
    """
    # ---- linear1 + ReLU: bf16 operands, f32 accumulation on the MXU --------
    xt = x_ref[0]
    if xt.dtype != jnp.bfloat16:
        xt = xt.astype(jnp.bfloat16)          # cast in VMEM (saves a wrapper HBM pass)
    h = jnp.dot(xt, w1_ref[...], preferred_element_type=jnp.float32)
    h = jnp.maximum(h + b1_ref[...], 0.0)     # (ts, out_pad) f32

    npool = o_ref.shape[1]                    # ts // k pooled rows in this tile
    if k == 1:
        p = h                                 # AvgPool1d(1, 1) is the identity
    else:
        # ---- AvgPool1d(k, k): k strided sublane reads + VPU adds -----------
        # (replaces the old pooling matmul: no MXU cost, no quadratically
        #  growing pool matrix in VMEM)
        h_ref[...] = h
        acc = h_ref[pl.ds(0, npool, stride=k), :]
        for j in range(1, k):                 # k is small & static -> unrolled
            acc = acc + h_ref[pl.ds(j, npool, stride=k), :]
        p = acc * (1.0 / k)

    # ---- linear2: Linear -> ReLU -> Linear ----------------------------------
    g = jnp.dot(p.astype(jnp.bfloat16), w2_ref[...],
                preferred_element_type=jnp.float32)
    g = jnp.maximum(g + b2_ref[...], 0.0)
    y = jnp.dot(g.astype(jnp.bfloat16), w3_ref[...],
                preferred_element_type=jnp.float32)
    o_ref[0] = (y + b3_ref[...]).astype(o_ref.dtype)


# ------------------------------- helpers --------------------------------------

def _round_up(x, m):
    return ((x + m - 1) // m) * m


def _vmem_capacity_bytes():
    """Physical VMEM of the current generation (v5e/v6e: 128 MiB, v7x: 64 MiB
    per TensorCore).  Falls back to the most conservative value if the query
    is unavailable."""
    try:
        info = pltpu.get_tpu_info()
        for name in ("vmem_capacity_bytes", "vmem_size_bytes", "vmem_bytes"):
            v = getattr(info, name, None)
            if v:
                return int(v)
    except Exception:
        pass
    return 64 * 1024 * 1024


def _choose_seq_tile(s_used, k, row_bytes, budget_bytes, batch, min_steps=4):
    """Sequence rows per grid step.

      * ts is a multiple of 8*k: the x tile keeps 8-row sublanes, pooling
        windows never straddle a tile, and the pooled tile (ts//k rows) keeps
        8-row sublanes too.
      * ts * row_bytes (everything that scales with ts) must fit the budget.
      * prefer tiles that leave the grid with >= min_steps total steps so the
        software pipeline (and v7x's two TensorCores) have work to overlap.
    Falls back to one tile over the whole used sequence when s_used is not a
    multiple of 8*k (full-extent blocks are always layout-legal).
    """
    base = 8 * k
    if s_used <= 0 or s_used % base != 0:
        return max(s_used, 1)
    divisors = [d for d in range(base, s_used + 1, base) if s_used % d == 0]
    fitting = [d for d in divisors if d * row_bytes <= budget_bytes] or [base]
    good = [d for d in fitting if batch * (s_used // d) >= min_steps]
    return max(good) if good else max(fitting)


# ------------------------------ weight packing --------------------------------

def pack_params(params):
    """One-time weight packing: lane-pad feature dims to multiples of 128 and
    cast matmul operands to bf16 (biases stay f32).  Doing this once, outside
    the per-call path, removes a full HBM read+write over all weights from
    every forward call."""
    in_dim, out_dim = params["w1"].shape
    in_pad, out_pad = _round_up(in_dim, 128), _round_up(out_dim, 128)

    def pad_w(w, rows, cols):
        return jnp.pad(w, ((0, rows - w.shape[0]),
                           (0, cols - w.shape[1]))).astype(jnp.bfloat16)

    def pad_b(b, cols):
        return jnp.pad(b, (0, cols - b.shape[0])).reshape(1, cols).astype(jnp.float32)

    return {
        "w1": pad_w(params["w1"], in_pad, out_pad), "b1": pad_b(params["b1"], out_pad),
        "w2": pad_w(params["w2"], out_pad, out_pad), "b2": pad_b(params["b2"], out_pad),
        "w3": pad_w(params["w3"], out_pad, out_pad), "b3": pad_b(params["b3"], out_pad),
    }


# -------------------------------- forward -------------------------------------

@functools.partial(jax.jit, static_argnames=("k", "out_dim"))
def linear_pool_connector_forward(x, packed, *, k, out_dim):
    """x: [B, S, in_dim] -> [B, S // k, out_dim] (f32). `packed` from pack_params."""
    B, S, in_dim = x.shape
    w1, b1 = packed["w1"], packed["b1"]
    w2, b2 = packed["w2"], packed["b2"]
    w3, b3 = packed["w3"], packed["b3"]
    in_pad, out_pad = w1.shape
    assert in_dim <= in_pad and out_dim <= out_pad

    s_out = S // k
    assert s_out >= 1, "sequence shorter than the pooling window"
    s_used = s_out * k                       # AvgPool1d(k, k) drops the tail

    # ---- activation prep: avoid extra HBM passes whenever possible ----------
    if in_pad != in_dim:
        # lane padding genuinely required -> one fused pad+cast pass (bf16
        # halves the bytes written/re-read for this copy).
        xk = jnp.pad(x[:, :s_used, :],
                     ((0, 0), (0, 0), (0, in_pad - in_dim))).astype(jnp.bfloat16)
    elif s_used != S and s_used % 8 != 0:
        xk = x[:, :s_used, :]                # rare ragged tail: slice for block legality
    else:
        xk = x                               # zero-copy: kernel casts in VMEM
    x_bytes = xk.dtype.itemsize

    # ---- VMEM budgeting (generation aware) ----------------------------------
    vmem_cap = _vmem_capacity_bytes()
    resident = int((w1.size + w2.size + w3.size) * 2        # bf16, single-buffered
                   + (b1.size + b2.size + b3.size) * 4)     # f32 biases
    # TODO(synk): add a weight-tiled (K-blocked, pl.when-accumulated) fallback
    # kernel for very large out_dim where the resident weights no longer fit
    # ~half of VMEM (hits v7x's 64 MiB first).
    # Bytes that scale with the sequence tile ts:
    #   x tile (x2 buffers) + f32 h (value + scratch)
    #   + per pooled row: output tile (x2 buffers) + p/g/y f32 temporaries.
    row_bytes = (2 * in_pad * x_bytes + 2 * 4 * out_pad
                 + (2 * 4 + 3 * 4) * out_pad / k)
    budget = max(int(0.45 * vmem_cap) - resident, 1 << 20)

    ts = _choose_seq_tile(s_used, k, row_bytes, budget, B)
    n_s = s_used // ts
    npool_t = ts // k

    need = resident + int(ts * row_bytes) + (2 << 20)
    vmem_limit = int(min(int(0.9 * vmem_cap), max(need + need // 2, 32 << 20)))

    flops = int(2 * B * s_used * in_pad * out_pad            # linear1
                + B * s_used * out_pad                       # pooling adds
                + 4 * B * s_out * out_pad * out_pad)         # linear2 (2 matmuls)
    bytes_accessed = int(xk.size * x_bytes + resident + B * s_out * out_pad * 4)

    kernel = functools.partial(_connector_kernel, k=k)
    # Whole-array VMEM operands: copied in once, single buffer (not pipelined).
    resident_spec = pl.BlockSpec(memory_space=pltpu.MemorySpace.VMEM)

    y = pl.pallas_call(
        kernel,
        out_shape=jax.ShapeDtypeStruct((B, s_out, out_pad), jnp.float32),
        grid=(B, n_s),
        in_specs=[
            pl.BlockSpec((1, ts, in_pad), lambda b, s: (b, s, 0)),  # x: streamed
            resident_spec,    # W1
            resident_spec,    # b1
            resident_spec,    # W2
            resident_spec,    # b2
            resident_spec,    # W3
            resident_spec,    # b3
        ],
        out_specs=pl.BlockSpec((1, npool_t, out_pad), lambda b, s: (b, s, 0)),
        scratch_shapes=[pltpu.VMEM((ts, out_pad), jnp.float32)],    # h scratch
        compiler_params=pltpu.CompilerParams(
            dimension_semantics=("parallel", "parallel"),
            vmem_limit_bytes=vmem_limit),
        cost_estimate=pl.CostEstimate(flops=flops, transcendentals=0,
                                      bytes_accessed=bytes_accessed),
    )(xk, w1, b1, w2, b2, w3, b3)

    # NOTE(review): downstream consumers that tolerate a lane-padded / bf16
    # tensor could take `y` directly and skip this slice pass.
    if out_pad != out_dim:
        y = y[:, :, :out_dim]
    return y


# ------------------------ deterministic param init ---------------------------

def init_params(key, in_dim, out_dim):
    """PyTorch nn.Linear stores weight as [out, in]; we keep the transposed
    [in, out] layout so the kernel computes x @ W directly."""
    ks = jax.random.split(key, 6)
    return {
        "w1": jax.random.normal(ks[0], (in_dim, out_dim), jnp.float32) * 0.02,
        "b1": jax.random.normal(ks[1], (out_dim,), jnp.float32) * 0.01,
        "w2": jax.random.normal(ks[2], (out_dim, out_dim), jnp.float32) * 0.02,
        "b2": jax.random.normal(ks[3], (out_dim,), jnp.float32) * 0.01,
        "w3": jax.random.normal(ks[4], (out_dim, out_dim), jnp.float32) * 0.02,
        "b3": jax.random.normal(ks[5], (out_dim,), jnp.float32) * 0.01,
    }


# ------------------------------ reference ------------------------------------

def _reference_forward(x, params, k):
    """Pure-JAX reference mirroring the module semantics and the kernel's
    precision policy (bf16 matmul operands, f32 accumulation)."""
    bf16, f32 = jnp.bfloat16, jnp.float32
    h = jnp.dot(x.astype(bf16), params["w1"].astype(bf16),
                preferred_element_type=f32) + params["b1"]
    h = jnp.maximum(h, 0.0)
    B, S, D = h.shape
    s_out = S // k
    p = h[:, :s_out * k, :].reshape(B, s_out, k, D).mean(axis=2)   # AvgPool1d(k, k)
    g = jnp.dot(p.astype(bf16), params["w2"].astype(bf16),
                preferred_element_type=f32) + params["b2"]
    g = jnp.maximum(g, 0.0)
    return jnp.dot(g.astype(bf16), params["w3"].astype(bf16),
                   preferred_element_type=f32) + params["b3"]


# -------------------------------- main ---------------------------------------

if __name__ == "__main__":
    key = jax.random.PRNGKey(0)
    kx, kp = jax.random.split(key)

    B, S = 2, 32
    in_dim, out_dim, k = 32, 48, 4

    x = jax.random.normal(kx, (B, S, in_dim), jnp.float32)
    params = init_params(kp, in_dim, out_dim)

    packed = pack_params(params)   # one-time weight pre-pack (pad + bf16 cast)
    y = linear_pool_connector_forward(x, packed, k=k, out_dim=out_dim)
    y = jax.block_until_ready(y)

    assert y.shape == (B, S // k, out_dim), y.shape
    ref = _reference_forward(x, params, k)
    max_err = float(jnp.max(jnp.abs(y - ref)))
    assert jnp.allclose(y, ref, atol=2e-3, rtol=2e-3), max_err

    print("KERNEL_OK")
</pallas_src>

<mosaic_0001>
module attributes {stable_mosaic.version = 11 : i64} {
  func.func @_connector_kernel(%arg0: i32, %arg1: i32, %arg2: memref<1x32x128xbf16, #tpu.memory_space<vmem>>, %arg3: memref<128x128xbf16, #tpu.memory_space<vmem>>, %arg4: memref<1x128xf32, #tpu.memory_space<vmem>>, %arg5: memref<128x128xbf16, #tpu.memory_space<vmem>>, %arg6: memref<1x128xf32, #tpu.memory_space<vmem>>, %arg7: memref<128x128xbf16, #tpu.memory_space<vmem>>, %arg8: memref<1x128xf32, #tpu.memory_space<vmem>>, %arg9: memref<1x8x128xf32, #tpu.memory_space<vmem>>, %arg10: memref<32x128xf32, #tpu.memory_space<vmem>>) attributes {dimension_semantics = [#tpu.dimension_semantics<parallel>, #tpu.dimension_semantics<parallel>], iteration_bounds = array<i64: 2, 1>, scalar_prefetch = 0 : i64, scratch_operands = 1 : i64, tpu.core_type = #tpu.core_type<tc>, window_params = [{transform_indices = @transform_0, window_bounds = array<i64: 1, 32, 128>}, {pipeline_mode = #tpu.pipeline_mode<synchronous>, transform_indices = @transform_1, window_bounds = array<i64: 128, 128>}, {pipeline_mode = #tpu.pipeline_mode<synchronous>, transform_indices = @transform_2, window_bounds = array<i64: 1, 128>}, {pipeline_mode = #tpu.pipeline_mode<synchronous>, transform_indices = @transform_3, window_bounds = array<i64: 128, 128>}, {pipeline_mode = #tpu.pipeline_mode<synchronous>, transform_indices = @transform_4, window_bounds = array<i64: 1, 128>}, {pipeline_mode = #tpu.pipeline_mode<synchronous>, transform_indices = @transform_5, window_bounds = array<i64: 128, 128>}, {pipeline_mode = #tpu.pipeline_mode<synchronous>, transform_indices = @transform_6, window_bounds = array<i64: 1, 128>}, {transform_indices = @transform_7, window_bounds = array<i64: 1, 8, 128>}]} {
    %c0 = arith.constant 0 : index
    %c0_0 = arith.constant 0 : index
    %c0_1 = arith.constant 0 : index
    %0 = vector.load %arg2[%c0, %c0_0, %c0_1] : memref<1x32x128xbf16, #tpu.memory_space<vmem>>, vector<1x32x128xbf16>
    %1 = vector.shape_cast %0 : vector<1x32x128xbf16> to vector<32x128xbf16>
    %c0_2 = arith.constant 0 : index
    %c0_3 = arith.constant 0 : index
    %2 = vector.load %arg3[%c0_2, %c0_3] : memref<128x128xbf16, #tpu.memory_space<vmem>>, vector<128x128xbf16>
    %cst = arith.constant dense<0.000000e+00> : vector<32x128xf32>
    %3 = tpu.matmul %1, %2, %cst {dimension_numbers = #tpu.dot_dimension_numbers<[1], [0], [0], [1], [0, 0, 1, 1], [], []>} : vector<32x128xbf16>, vector<128x128xbf16>, vector<32x128xf32> -> vector<32x128xf32>
    %c0_4 = arith.constant 0 : index
    %c0_5 = arith.constant 0 : index
    %4 = vector.load %arg4[%c0_4, %c0_5] : memref<1x128xf32, #tpu.memory_space<vmem>>, vector<1x128xf32>
    %5 = vector.broadcast %4 : vector<1x128xf32> to vector<32x128xf32>
    %6 = arith.addf %3, %5 : vector<32x128xf32>
    %cst_6 = arith.constant 0.000000e+00 : f32
    %7 = vector.broadcast %cst_6 : f32 to vector<32x128xf32>
    %8 = arith.maximumf %6, %7 : vector<32x128xf32>
    %c0_7 = arith.constant 0 : index
    %c0_8 = arith.constant 0 : index
    %9 = vector.load %arg10[%c0_7, %c0_8] : memref<32x128xf32, #tpu.memory_space<vmem>>, vector<32x128xf32>
    tpu.vector_store %arg10[%c0_7, %c0_8], %8 {strides = array<i32>} : memref<32x128xf32, #tpu.memory_space<vmem>>, vector<32x128xf32>,
    %c0_9 = arith.constant 0 : index
    %c0_10 = arith.constant 0 : index
    %10 = tpu.strided_load %arg10[%c0_9, %c0_10] {strides = array<i32: 4, 1>} : memref<32x128xf32, #tpu.memory_space<vmem>>, vector<8x128xf32>
    %c1 = arith.constant 1 : index
    %c0_11 = arith.constant 0 : index
    %11 = tpu.strided_load %arg10[%c1, %c0_11] {strides = array<i32: 4, 1>} : memref<32x128xf32, #tpu.memory_space<vmem>>, vector<8x128xf32>
    %12 = arith.addf %10, %11 : vector<8x128xf32>
    %c2 = arith.constant 2 : index
    %c0_12 = arith.constant 0 : index
    %13 = tpu.strided_load %arg10[%c2, %c0_12] {strides = array<i32: 4, 1>} : memref<32x128xf32, #tpu.memory_space<vmem>>, vector<8x128xf32>
    %14 = arith.addf %12, %13 : vector<8x128xf32>
    %c3 = arith.constant 3 : index
    %c0_13 = arith.constant 0 : index
    %15 = tpu.strided_load %arg10[%c3, %c0_13] {strides = array<i32: 4, 1>} : memref<32x128xf32, #tpu.memory_space<vmem>>, vector<8x128xf32>
    %16 = arith.addf %14, %15 : vector<8x128xf32>
    %cst_14 = arith.constant 2.500000e-01 : f32
    %17 = vector.broadcast %cst_14 : f32 to vector<8x128xf32>
    %18 = arith.mulf %16, %17 : vector<8x128xf32>
    %19 = arith.truncf %18 : vector<8x128xf32> to vector<8x128xbf16>
    %c0_15 = arith.constant 0 : index
    %c0_16 = arith.constant 0 : index
    %20 = vector.load %arg5[%c0_15, %c0_16] : memref<128x128xbf16, #tpu.memory_space<vmem>>, vector<128x128xbf16>
    %cst_17 = arith.constant dense<0.000000e+00> : vector<8x128xf32>
    %21 = tpu.matmul %19, %20, %cst_17 {dimension_numbers = #tpu.dot_dimension_numbers<[1], [0], [0], [1], [0, 0, 1, 1], [], []>} : vector<8x128xbf16>, vector<128x128xbf16>, vector<8x128xf32> -> vector<8x128xf32>
    %c0_18 = arith.constant 0 : index
    %c0_19 = arith.constant 0 : index
    %22 = vector.load %arg6[%c0_18, %c0_19] : memref<1x128xf32, #tpu.memory_space<vmem>>, vector<1x128xf32>
    %23 = vector.broadcast %22 : vector<1x128xf32> to vector<8x128xf32>
    %24 = arith.addf %21, %23 : vector<8x128xf32>
    %cst_20 = arith.constant 0.000000e+00 : f32
    %25 = vector.broadcast %cst_20 : f32 to vector<8x128xf32>
    %26 = arith.maximumf %24, %25 : vector<8x128xf32>
    %27 = arith.truncf %26 : vector<8x128xf32> to vector<8x128xbf16>
    %c0_21 = arith.constant 0 : index
    %c0_22 = arith.constant 0 : index
    %28 = vector.load %arg7[%c0_21, %c0_22] : memref<128x128xbf16, #tpu.memory_space<vmem>>, vector<128x128xbf16>
    %cst_23 = arith.constant dense<0.000000e+00> : vector<8x128xf32>
    %29 = tpu.matmul %27, %28, %cst_23 {dimension_numbers = #tpu.dot_dimension_numbers<[1], [0], [0], [1], [0, 0, 1, 1], [], []>} : vector<8x128xbf16>, vector<128x128xbf16>, vector<8x128xf32> -> vector<8x128xf32>
    %c0_24 = arith.constant 0 : index
    %c0_25 = arith.constant 0 : index
    %30 = vector.load %arg8[%c0_24, %c0_25] : memref<1x128xf32, #tpu.memory_space<vmem>>, vector<1x128xf32>
    %31 = vector.broadcast %30 : vector<1x128xf32> to vector<8x128xf32>
    %32 = arith.addf %29, %31 : vector<8x128xf32>
    %c0_26 = arith.constant 0 : index
    %c0_27 = arith.constant 0 : index
    %c0_28 = arith.constant 0 : index
    %33 = vector.load %arg9[%c0_26, %c0_27, %c0_28] : memref<1x8x128xf32, #tpu.memory_space<vmem>>, vector<1x8x128xf32>
    %34 = vector.shape_cast %33 : vector<1x8x128xf32> to vector<8x128xf32>
    %35 = vector.shape_cast %32 : vector<8x128xf32> to vector<1x8x128xf32>
    tpu.vector_store %arg9[%c0_26, %c0_27, %c0_28], %35 {strides = array<i32>} : memref<1x8x128xf32, #tpu.memory_space<vmem>>, vector<1x8x128xf32>,
    return
  }
  func.func @transform_0(%arg0: i32, %arg1: i32) -> (i32, i32, i32) {
    %c0_i32 = arith.constant 0 : i32
    %c0_i32_0 = arith.constant 0 : i32
    return %arg0, %arg1, %c0_i32 : i32, i32, i32
  }
  func.func @transform_1(%arg0: i32, %arg1: i32) -> (i32, i32) {
    %c0_i32 = arith.constant 0 : i32
    %c0_i32_0 = arith.constant 0 : i32
    %c0_i32_1 = arith.constant 0 : i32
    return %c0_i32, %c0_i32_0 : i32, i32
  }
  func.func @transform_2(%arg0: i32, %arg1: i32) -> (i32, i32) {
    %c0_i32 = arith.constant 0 : i32
    %c0_i32_0 = arith.constant 0 : i32
    %c0_i32_1 = arith.constant 0 : i32
    return %c0_i32, %c0_i32_0 : i32, i32
  }
  func.func @transform_3(%arg0: i32, %arg1: i32) -> (i32, i32) {
    %c0_i32 = arith.constant 0 : i32
    %c0_i32_0 = arith.constant 0 : i32
    %c0_i32_1 = arith.constant 0 : i32
    return %c0_i32, %c0_i32_0 : i32, i32
  }
  func.func @transform_4(%arg0: i32, %arg1: i32) -> (i32, i32) {
    %c0_i32 = arith.constant 0 : i32
    %c0_i32_0 = arith.constant 0 : i32
    %c0_i32_1 = arith.constant 0 : i32
    return %c0_i32, %c0_i32_0 : i32, i32
  }
  func.func @transform_5(%arg0: i32, %arg1: i32) -> (i32, i32) {
    %c0_i32 = arith.constant 0 : i32
    %c0_i32_0 = arith.constant 0 : i32
    %c0_i32_1 = arith.constant 0 : i32
    return %c0_i32, %c0_i32_0 : i32, i32
  }
  func.func @transform_6(%arg0: i32, %arg1: i32) -> (i32, i32) {
    %c0_i32 = arith.constant 0 : i32
    %c0_i32_0 = arith.constant 0 : i32
    %c0_i32_1 = arith.constant 0 : i32
    return %c0_i32, %c0_i32_0 : i32, i32
  }
  func.func @transform_7(%arg0: i32, %arg1: i32) -> (i32, i32, i32) {
    %c0_i32 = arith.constant 0 : i32
    %c0_i32_0 = arith.constant 0 : i32
    return %arg0, %arg1, %c0_i32 : i32, i32, i32
  }
}

</mosaic_0001>

<llo_original>
// kernel: linear_pool_connector_forward.1
$region0: #{linear_pool_connector_forward.1}
  #allocation0 [shape = 'u32[]', space=smem, size = 0x4, offset = 0x4, fixed_abs, tag = 'smem constant byte address 0x4 - core index']
  #allocation1 [shape = 'u32[144,128]{1,0:T(1,128)}', space=vmem, size = 0x12000, scoped, tag = 'internal scratch']
  #allocation2 [shape = 'f32[32,128]{1,0:T(8,128)}', space=vmem, size = 0x4000, scoped, tag = 'scratch operand']
  %s0 = inlined_call_operand.vmem [shape: bf16[2,32,128], index: 0, kind: input, shape index: {}]
  %s1 = inlined_call_operand.vmem [shape: bf16[128,128], index: 1, kind: input, shape index: {}]
  %s2 = inlined_call_operand.vmem [shape: f32[1,128], index: 2, kind: input, shape index: {}]
  %s3 = inlined_call_operand.vmem [shape: bf16[128,128], index: 3, kind: input, shape index: {}]
  %s4 = inlined_call_operand.vmem [shape: f32[1,128], index: 4, kind: input, shape index: {}]
  %s5 = inlined_call_operand.hbm [shape: bf16[128,128], index: 5, kind: input, shape index: {}]
  %s6 = inlined_call_operand.vmem [shape: f32[1,128], index: 6, kind: input, shape index: {}]
  %s7 = inlined_call_operand.hbm [shape: f32[2,8,128], index: 7, kind: output, shape index: {}]
  %s8 = sld [smem:[#allocation0]]
  $region65: #{linear_pool_connector_forward.1} parent=0
    _
  %s10 = ssub.s32 1, %s8
  %s11 = scalar_select 0, %s10, %s8
  $region1: #{linear_pool_connector_forward.1} parent=0
    #allocation3 [shape = 'u8[32768]{0}', space=vmem, size = 0x8000, scoped, tag = 'input window, operand 5, single buffered']
    #allocation4 [shape = 's32[2]{0}', space=sflag, size = 0x8, scoped, tag = 'scoped memory for linear_pool_connector_forward.1']
    #allocation5 [shape = 's32[2]{0}', space=sflag, size = 0x8, scoped, tag = 'scoped memory for linear_pool_connector_forward.1']
    #allocation6 [shape = 'u8[8192]{0}', space=vmem, size = 0x2000, scoped, tag = 'output window, operand 0']
    %12 = vsyncpa [#allocation4], 0
    %13 = vsyncpa [#allocation5], 0
    %s14 = scalar_lea.sflag [#allocation5], 1
    %15 = vsyncpa %s14, 0
    loop: start=0, step=1, limit=4
    $region2: #{linear_pool_connector_forward.1} parent=1 // loop_pre_header
      _
    $region3: #{linear_pool_connector_forward.1} parent=1 // loop_header
      %s17 = sphi 0, %s21
      %p18 = scmp.ge.s32.totalorder %s17, 4
      %s24 = sphi 0, %s36
      %s25 = sphi 0, %s32
      %s26 = sphi 0, %s24
      %s27 = sphi 0, %s25
      %s28 = sphi 0, %s26
      %s29 = sphi 0, %s27
      %s41 = sphi 0, %s43
      %s44 = sphi 0, %s41
      %s45 = sphi 0, %s44
      %s61 = sphi 0, %s45
      %s65 = sphi 0, %s65
      %s67 = sphi 0, %s65
      %s68 = sphi 0, %s67
      %s82 = sphi 0, %s68
      %s86 = sphi 0, %s86
      %s88 = sphi 0, %s86
      %s89 = sphi 0, %s88
      %s103 = sphi 0, %s89
      %s107 = sphi 0, %s107
      %s109 = sphi 0, %s107
      %s110 = sphi 0, %s109
      %s124 = sphi 0, %s110
      %s128 = sphi 0, %s128
      %s130 = sphi 0, %s128
      %s131 = sphi 0, %s130
      %s145 = sphi 0, %s131
      %s149 = sphi 0, %s149
      %s151 = sphi 0, %s149
      %s152 = sphi 0, %s151
      %s166 = sphi 0, %s152
      %s170 = sphi 0, %s170
      %s172 = sphi 0, %s170
      %s173 = sphi 0, %s172
      %s187 = sphi 0, %s173
      %s195 = sphi 0, %s197
      %s198 = sphi 0, %s195
      %s199 = sphi 0, %s198
      %s215 = sphi 0, %s199
    $region4: #{linear_pool_connector_forward.1} parent=1 // loop_header_branch
      %20 = sbr.rel (%p18) target = $region8
    $region5: #{linear_pool_connector_forward.1} parent=1 // loop_body
      %s22 = ssub.s32 %s17, 1
      %s23 = ssub.s32 %s17, 2
      %s30 = sadd.s32 1, %s25
      %p31 = scmp.ge.s32.totalorder %s30, 1
      %s32 = scalar_select %p31, 0, %s30
      %s33 = sadd.s32 1, %s24
      %s34 = scalar_select %p31, %s33, %s24
      %p35 = scmp.ge.s32.totalorder %s34, 2
      %s36 = scalar_select %p35, 0, %s34
      %s37 = ssub.s32 %s24, %s36
      %s38 = ssub.s32 %s25, %s32
      %s39 = sor.u32 %s37, %s38
      %p40 = scmp.eq.s32.totalorder %s39, 0
      %s42 = sadd.s32 %s41, 1
      %s43 = scalar_select %p40, %s41, %s42
      %p46 = pneg %p40
      %p47 = scmp.eq.s32.totalorder %s17, 1
      %p48 = por %p46, %p47
      %p49 = scmp.ne.s32.totalorder %s41, %s44
      %p50 = scmp.eq.s32.totalorder %s17, 0
      %p51 = por %p49, %p50
      %p52 = scmp.ne.s32.totalorder %s41, %s44
      %p53 = scmp.eq.s32.totalorder %s22, 1
      %p54 = por %p52, %p53
      %p55 = scmp.ne.s32.totalorder %s44, %s45
      %p56 = scmp.eq.s32.totalorder %s22, 0
      %p57 = por %p55, %p56
      %p58 = scmp.ne.s32.totalorder %s44, %s45
      %p59 = scmp.eq.s32.totalorder %s23, 1
      %p60 = por %p58, %p59
      %p62 = scmp.ne.s32.totalorder %s45, %s61
      %p63 = scmp.eq.s32.totalorder %s23, 0
      %p64 = por %p62, %p63
      %s66 = sadd.s32 %s65, 1
      %p69 = scmp.eq.s32.totalorder %s17, 1
      %p70 = scmp.ne.s32.totalorder %s65, %s67
      %p71 = scmp.eq.s32.totalorder %s17, 0
      %p72 = por %p70, %p71
      %p73 = scmp.ne.s32.totalorder %s65, %s67
      %p74 = scmp.eq.s32.totalorder %s22, 1
      %p75 = por %p73, %p74
      %p76 = scmp.ne.s32.totalorder %s67, %s68
      %p77 = scmp.eq.s32.totalorder %s22, 0
      %p78 = por %p76, %p77
      %p79 = scmp.ne.s32.totalorder %s67, %s68
      %p80 = scmp.eq.s32.totalorder %s23, 1
      %p81 = por %p79, %p80
      %p83 = scmp.ne.s32.totalorder %s68, %s82
      %p84 = scmp.eq.s32.totalorder %s23, 0
      %p85 = por %p83, %p84
      %s87 = sadd.s32 %s86, 1
      %p90 = scmp.eq.s32.totalorder %s17, 1
      %p91 = scmp.ne.s32.totalorder %s86, %s88
      %p92 = scmp.eq.s32.totalorder %s17, 0
      %p93 = por %p91, %p92
      %p94 = scmp.ne.s32.totalorder %s86, %s88
      %p95 = scmp.eq.s32.totalorder %s22, 1
      %p96 = por %p94, %p95
      %p97 = scmp.ne.s32.totalorder %s88, %s89
      %p98 = scmp.eq.s32.totalorder %s22, 0
      %p99 = por %p97, %p98
      %p100 = scmp.ne.s32.totalorder %s88, %s89
      %p101 = scmp.eq.s32.totalorder %s23, 1
      %p102 = por %p100, %p101
      %p104 = scmp.ne.s32.totalorder %s89, %s103
      %p105 = scmp.eq.s32.totalorder %s23, 0
      %p106 = por %p104, %p105
      %s108 = sadd.s32 %s107, 1
      %p111 = scmp.eq.s32.totalorder %s17, 1
      %p112 = scmp.ne.s32.totalorder %s107, %s109
      %p113 = scmp.eq.s32.totalorder %s17, 0
      %p114 = por %p112, %p113
      %p115 = scmp.ne.s32.totalorder %s107, %s109
      %p116 = scmp.eq.s32.totalorder %s22, 1
      %p117 = por %p115, %p116
      %p118 = scmp.ne.s32.totalorder %s109, %s110
      %p119 = scmp.eq.s32.totalorder %s22, 0
      %p120 = por %p118, %p119
      %p121 = scmp.ne.s32.totalorder %s109, %s110
      %p122 = scmp.eq.s32.totalorder %s23, 1
      %p123 = por %p121, %p122
      %p125 = scmp.ne.s32.totalorder %s110, %s124
      %p126 = scmp.eq.s32.totalorder %s23, 0
      %p127 = por %p125, %p126
      %s129 = sadd.s32 %s128, 1
      %p132 = scmp.eq.s32.totalorder %s17, 1
      %p133 = scmp.ne.s32.totalorder %s128, %s130
      %p134 = scmp.eq.s32.totalorder %s17, 0
      %p135 = por %p133, %p134
      %p136 = scmp.ne.s32.totalorder %s128, %s130
      %p137 = scmp.eq.s32.totalorder %s22, 1
      %p138 = por %p136, %p137
      %p139 = scmp.ne.s32.totalorder %s130, %s131
      %p140 = scmp.eq.s32.totalorder %s22, 0
      %p141 = por %p139, %p140
      %p142 = scmp.ne.s32.totalorder %s130, %s131
      %p143 = scmp.eq.s32.totalorder %s23, 1
      %p144 = por %p142, %p143
      %p146 = scmp.ne.s32.totalorder %s131, %s145
      %p147 = scmp.eq.s32.totalorder %s23, 0
      %p148 = por %p146, %p147
      %s150 = sadd.s32 %s149, 1
      %p153 = scmp.eq.s32.totalorder %s17, 1
      %p154 = scmp.ne.s32.totalorder %s149, %s151
      %p155 = scmp.eq.s32.totalorder %s17, 0
      %p156 = por %p154, %p155
      %p157 = scmp.ne.s32.totalorder %s149, %s151
      %p158 = scmp.eq.s32.totalorder %s22, 1
      %p159 = por %p157, %p158
      %p160 = scmp.ne.s32.totalorder %s151, %s152
      %p161 = scmp.eq.s32.totalorder %s22, 0
      %p162 = por %p160, %p161
      %p163 = scmp.ne.s32.totalorder %s151, %s152
      %p164 = scmp.eq.s32.totalorder %s23, 1
      %p165 = por %p163, %p164
      %p167 = scmp.ne.s32.totalorder %s152, %s166
      %p168 = scmp.eq.s32.totalorder %s23, 0
      %p169 = por %p167, %p168
      %s171 = sadd.s32 %s170, 1
      %p174 = scmp.eq.s32.totalorder %s17, 1
      %p175 = scmp.ne.s32.totalorder %s170, %s172
      %p176 = scmp.eq.s32.totalorder %s17, 0
      %p177 = por %p175, %p176
      %p178 = scmp.ne.s32.totalorder %s170, %s172
      %p179 = scmp.eq.s32.totalorder %s22, 1
      %p180 = por %p178, %p179
      %p181 = scmp.ne.s32.totalorder %s172, %s173
      %p182 = scmp.eq.s32.totalorder %s22, 0
      %p183 = por %p181, %p182
      %p184 = scmp.ne.s32.totalorder %s172, %s173
      %p185 = scmp.eq.s32.totalorder %s23, 1
      %p186 = por %p184, %p185
      %p188 = scmp.ne.s32.totalorder %s173, %s187
      %p189 = scmp.eq.s32.totalorder %s23, 0
      %p190 = por %p188, %p189
      %s191 = ssub.s32 %s24, %s36
      %s192 = ssub.s32 %s25, %s32
      %s193 = sor.u32 %s191, %s192
      %p194 = scmp.eq.s32.totalorder %s193, 0
      %s196 = sadd.s32 %s195, 1
      %s197 = scalar_select %p194, %s195, %s196
      %p200 = pneg %p194
      %p201 = scmp.eq.s32.totalorder %s17, 1
      %p202 = por %p200, %p201
      %p203 = scmp.ne.s32.totalorder %s195, %s198
      %p204 = scmp.eq.s32.totalorder %s17, 0
      %p205 = por %p203, %p204
      %p206 = scmp.ne.s32.totalorder %s195, %s198
      %p207 = scmp.eq.s32.totalorder %s22, 1
      %p208 = por %p206, %p207
      %p209 = scmp.ne.s32.totalorder %s198, %s199
      %p210 = scmp.eq.s32.totalorder %s22, 0
      %p211 = por %p209, %p210
      %p212 = scmp.ne.s32.totalorder %s198, %s199
      %p213 = scmp.eq.s32.totalorder %s23, 1
      %p214 = por %p212, %p213
      %p216 = scmp.ne.s32.totalorder %s199, %s215
      %p217 = scmp.eq.s32.totalorder %s23, 0
      %p218 = por %p216, %p217
      %p219 = scmp.le.s32.totalorder 1, %s17
      %p220 = scmp.lt.s32.totalorder %s17, 3
      %p221 = pnand %p219, %p220
      %p222 = pneg %p221
      // Predicated region
      $region9: #{linear_pool_connector_forward.1} parent=5 // pred_check
        _
      $region10: #{linear_pool_connector_forward.1} parent=5 // pred_check_branch
        %224 = sbr.rel (%p221) target = $region12
      $region11: #{linear_pool_connector_forward.1} parent=5 // pred_region
        %s225 = ssub.s32 %s17, 1
        // Predicated region
        $region13: #{linear_pool_connector_forward.1} parent=11 // pred_check
          %p226 = pneg %p78
        $region14: #{linear_pool_connector_forward.1} parent=11 // pred_check_branch
          %228 = sbr.rel (%p226) target = $region16
        $region15: #{linear_pool_connector_forward.1} parent=11 // pred_region
          _
        $region16: #{linear_pool_connector_forward.1} parent=11 // pred_fallthru
          _
        // Predicated region
        $region17: #{linear_pool_connector_forward.1} parent=11 // pred_check
          %p229 = pneg %p99
        $region18: #{linear_pool_connector_forward.1} parent=11 // pred_check_branch
          %231 = sbr.rel (%p229) target = $region20
        $region19: #{linear_pool_connector_forward.1} parent=11 // pred_region
          _
        $region20: #{linear_pool_connector_forward.1} parent=11 // pred_fallthru
          _
        // Predicated region
        $region21: #{linear_pool_connector_forward.1} parent=11 // pred_check
          %p232 = pneg %p120
        $region22: #{linear_pool_connector_forward.1} parent=11 // pred_check_branch
          %234 = sbr.rel (%p232) target = $region24
        $region23: #{linear_pool_connector_forward.1} parent=11 // pred_region
          _
        $region24: #{linear_pool_connector_forward.1} parent=11 // pred_fallthru
          _
        // Predicated region
        $region25: #{linear_pool_connector_forward.1} parent=11 // pred_check
          %p235 = pneg %p141
        $region26: #{linear_pool_connector_forward.1} parent=11 // pred_check_branch
          %237 = sbr.rel (%p235) target = $region28
        $region27: #{linear_pool_connector_forward.1} parent=11 // pred_region
          _
        $region28: #{linear_pool_connector_forward.1} parent=11 // pred_fallthru
          _
        // Predicated region
        $region29: #{linear_pool_connector_forward.1} parent=11 // pred_check
          %p238 = pneg %p162
        $region30: #{linear_pool_connector_forward.1} parent=11 // pred_check_branch
          %240 = sbr.rel (%p238) target = $region32
        $region31: #{linear_pool_connector_forward.1} parent=11 // pred_region
          %s242 = ssub.s32 1024, 1024
          %243 = vsyncadd [#allocation4], %s242
          %s244 = sshll.u32 [#allocation3], 4
          %s245 = int_to_ptr.vmem [resolvable:$true] %s244
          %250 = dma.hbm_to_vmem [thread:$0]  %s5, 1024, %s245, [#allocation4], 64, 64, 4
        $region32: #{linear_pool_connector_forward.1} parent=11 // pred_fallthru
          _
        // Predicated region
        $region33: #{linear_pool_connector_forward.1} parent=11 // pred_check
          %p251 = pneg %p183
        $region34: #{linear_pool_connector_forward.1} parent=11 // pred_check_branch
          %253 = sbr.rel (%p251) target = $region36
        $region35: #{linear_pool_connector_forward.1} parent=11 // pred_region
          _
        $region36: #{linear_pool_connector_forward.1} parent=11 // pred_fallthru
          _
      $region12: #{linear_pool_connector_forward.1} parent=5 // pred_fallthru
        _
      %p254 = scmp.lt.s32.totalorder %s17, 2
      // Predicated region
      $region37: #{linear_pool_connector_forward.1} parent=5 // pred_check
        %p255 = pneg %p254
      $region38: #{linear_pool_connector_forward.1} parent=5 // pred_check_branch
        %257 = sbr.rel (%p255) target = $region40
      $region39: #{linear_pool_connector_forward.1} parent=5 // pred_region
        // Predicated region
        $region41: #{linear_pool_connector_forward.1} parent=39 // pred_check
          %p258 = pneg %p51
        $region42: #{linear_pool_connector_forward.1} parent=39 // pred_check_branch
          %260 = sbr.rel (%p258) target = $region44
        $region43: #{linear_pool_connector_forward.1} parent=39 // pred_region
          %s261 = smul.u32 4, %s25
          %p262 = scmp.lt.s32.totalorder %s24, 1
          %s263 = scalar_select %p262, %s24, 1
          %p264 = scmp.lt.s32.totalorder %s261, 3
          %s265 = scalar_select %p264, %s261, 3
          %s266 = smul.addr %s263, 4
          %s267 = sadd.s32 %s265, %s266
          %s268 = smul.addr %s267, 4
          %s269 = scalar_lea.vmem %s0, %s268
          %s270 = smul.u32 4, %s25
        $region44: #{linear_pool_connector_forward.1} parent=39 // pred_fallthru
          _
      $region40: #{linear_pool_connector_forward.1} parent=5 // pred_fallthru
        _
      %p271 = scmp.le.s32.totalorder 1, %s17
      %p272 = scmp.lt.s32.totalorder %s17, 3
      %p273 = pnand %p271, %p272
      %p274 = pneg %p273
      // Predicated region
      $region45: #{linear_pool_connector_forward.1} parent=5 // pred_check
        _
      $region46: #{linear_pool_connector_forward.1} parent=5 // pred_check_branch
        %276 = sbr.rel (%p273) target = $region48
      $region47: #{linear_pool_connector_forward.1} parent=5 // pred_region
        %s277 = ssub.s32 %s17, 1
        // Predicated region
        $region49: #{linear_pool_connector_forward.1} parent=47 // pred_check
          %p278 = pneg %p162
        $region50: #{linear_pool_connector_forward.1} parent=47 // pred_check_branch
          %280 = sbr.rel (%p278) target = $region52
        $region51: #{linear_pool_connector_forward.1} parent=47 // pred_region
          %281 = dma.done [#allocation4], 1024
        $region52: #{linear_pool_connector_forward.1} parent=47 // pred_fallthru
          _
        %s282 = smul.u32 4, %s27
        %p283 = scmp.lt.s32.totalorder %s26, 1
        %s284 = scalar_select %p283, %s26, 1
        %p285 = scmp.lt.s32.totalorder %s282, 3
        %s286 = scalar_select %p285, %s282, 3
        %s287 = smul.addr %s284, 4
        %s288 = sadd.s32 %s286, %s287
        %s289 = smul.addr %s288, 4
        %s290 = scalar_lea.vmem %s0, %s289
        %p291 = pneg %p57
        %p292 = pneg %p54
        %p293 = pneg %p78
        %p294 = pneg %p75
        %p295 = pneg %p99
        %p296 = pneg %p96
        %p297 = pneg %p120
        %p298 = pneg %p117
        %p299 = pneg %p141
        %p300 = pneg %p138
        %p301 = pneg %p162
        %p302 = pneg %p159
        %p303 = pneg %p183
        %p304 = pneg %p180
        %p305 = pneg %p211
        %p306 = pneg %p208
        %s307 = sand.u32 %s198, 1
        %s308 = scalar_lea.sflag [#allocation5], %s307
        %s309 = sand.u32 %s198, 1
        %s310 = smul.addr %s309, 8
        %s311 = scalar_lea.vmem [#allocation6], %s310
        %s312 = smul.u32 4, %s27
        %p313 = scmp.lt.s32.totalorder %s26, 1
        %s314 = scalar_select %p313, %s26, 1
        %p315 = scmp.lt.s32.totalorder %s312, 3
        %s316 = scalar_select %p315, %s312, 3
        %s317 = smul.addr %s314, 4
        %s318 = sadd.s32 %s316, %s317
        %s319 = smul.addr %s318, 4
        %s320 = scalar_lea.vmem %s0, %s319
        %s321 = smul.u32 4, %s27
        %v323 = vld [vmem:[%s320] sm:$0xf]
        %v324 = vld [vmem:[%s320 + $0x4] sm:$0xf]
        %v325 = vld [vmem:[%s320 + $0x8] sm:$0xf]
        %v326 = vld [vmem:[%s320 + $0xc] sm:$0xf]
        %v327 = vld [vmem:[%s1] sm:$0xf]
        %v328 = vld [vmem:[%s1 + $0x4] sm:$0xf]
        %v329 = vld [vmem:[%s1 + $0x8] sm:$0xf]
        %v330 = vld [vmem:[%s1 + $0xc] sm:$0xf]
        %v331 = vld [vmem:[%s1 + $0x10] sm:$0xf]
        %v332 = vld [vmem:[%s1 + $0x14] sm:$0xf]
        %v333 = vld [vmem:[%s1 + $0x18] sm:$0xf]
        %v334 = vld [vmem:[%s1 + $0x1c] sm:$0xf]
        %v335 = vld [vmem:[%s1 + $0x20] sm:$0xf]
        %v336 = vld [vmem:[%s1 + $0x24] sm:$0xf]
        %v337 = vld [vmem:[%s1 + $0x28] sm:$0xf]
        %v338 = vld [vmem:[%s1 + $0x2c] sm:$0xf]
        %v339 = vld [vmem:[%s1 + $0x30] sm:$0xf]
        %v340 = vld [vmem:[%s1 + $0x34] sm:$0xf]
        %v341 = vld [vmem:[%s1 + $0x38] sm:$0xf]
        %v342 = vld [vmem:[%s1 + $0x3c] sm:$0xf]
        %v343 = vld [vmem:[%s2] sm:$0x1]
        %v345 = vlaneseq
        %v346 = vshrl.u32 %v345, 7
        %v347 = vsub.s32 0, %v346
        %v348 = vrot.slane %v343, %v347
        %v354 = vunpack.c.l.b16 %v323
        %v355 = vunpack.c.l.b16 %v324
        %v356 = vunpack.c.l.b16 %v325
        %v357 = vunpack.c.l.b16 %v326
        %v358 = vpack.c.b16 %v355, %v354
        %v359 = vpack.c.b16 %v357, %v356
        %v378 = vunpack.c.l.b16 %v327
        %v379 = vunpack.c.l.b16 %v328
        %v380 = vunpack.c.l.b16 %v329
        %v381 = vunpack.c.l.b16 %v330
        %v382 = vunpack.c.l.b16 %v331
        %v383 = vunpack.c.l.b16 %v332
        %v384 = vunpack.c.l.b16 %v333
        %v385 = vunpack.c.l.b16 %v334
        %v386 = vunpack.c.l.b16 %v335
        %v387 = vunpack.c.l.b16 %v336
        %v388 = vunpack.c.l.b16 %v337
        %v389 = vunpack.c.l.b16 %v338
        %v390 = vunpack.c.l.b16 %v339
        %v391 = vunpack.c.l.b16 %v340
        %v392 = vunpack.c.l.b16 %v341
        %v393 = vunpack.c.l.b16 %v342
        %v394 = vpack.c.b16 %v379, %v378
        %v395 = vpack.c.b16 %v381, %v380
        %v396 = vpack.c.b16 %v383, %v382
        %v397 = vpack.c.b16 %v385, %v384
        %v398 = vpack.c.b16 %v387, %v386
        %v399 = vpack.c.b16 %v389, %v388
        %v400 = vpack.c.b16 %v391, %v390
        %v401 = vpack.c.b16 %v393, %v392
        %410 = vmatprep.subr.bf16.mxu0 0
        %411 = vmatpush1.bf16.msra.mxu0 %v401
        %412 = vmatprep.subr.bf16.mxu0 0
        %413 = vmatpush1.bf16.msra.mxu0 %v400
        %414 = vmatprep.subr.bf16.mxu0 0
        %415 = vmatpush1.bf16.msra.mxu0 %v399
        %416 = vmatprep.subr.bf16.mxu0 0
        %417 = vmatpush1.bf16.msra.mxu0 %v398
        %418 = vmatprep.subr.bf16.mxu0 0
        %419 = vmatpush1.bf16.msra.mxu0 %v397
        %420 = vmatprep.subr.bf16.mxu0 0
        %421 = vmatpush1.bf16.msra.mxu0 %v396
        %422 = vmatprep.subr.bf16.mxu0 0
        %423 = vmatpush1.bf16.msra.mxu0 %v395
        %424 = vmatprep.subr.bf16.mxu0 0
        %425 = vmatpush1.bf16.msra.mxu0 %v394
        %426 = vmatprep.subr.bf16.mxu0 0
        %427 = vmatpush2.bf16.msra.mxu0 0
        %428 = vmatprep.subr.bf16.mxu0 0
        %429 = vmatpush2.bf16.msra.mxu0 0
        %430 = vmatprep.subr.bf16.mxu0 0
        %431 = vmatpush2.bf16.msra.mxu0 0
        %432 = vmatprep.subr.bf16.mxu0 0
        %433 = vmatpush2.bf16.msra.mxu0 0
        %434 = vmatprep.subr.bf16.mxu0 0
        %435 = vmatpush2.bf16.msra.mxu0 0
        %436 = vmatprep.subr.bf16.mxu0 0
        %437 = vmatpush2.bf16.msra.mxu0 0
        %438 = vmatprep.subr.bf16.mxu0 0
        %439 = vmatpush2.bf16.msra.mxu0 0
        %440 = vmatprep.subr.bf16.mxu0 0
        %441 = vmatpush2.bf16.msra.mxu0 0
        %442 = vmatprep.mubr.bf16.mxu0 0
        %443 = vmatmul.mubr.bf16.gmra.mxu0 %v358
        %v444 = vpop.f32.mrf.mxu0
        %v445 = vadd.f32 %v348, %v444
        %v446 = vpop.f32.mrf.mxu0
        %v447 = vpop.f32.mrf.mxu0
        %v448 = vadd.f32 %v348, %v447
        %v449 = vpop.f32.mrf.mxu0
        %450 = vmatprep.mubr.bf16.mxu0 0
        %451 = vmatmul.mubr.bf16.gmra.mxu0 %v359
        %v452 = vpop.f32.mrf.mxu0
        %v453 = vadd.f32 %v348, %v452
        %v454 = vpop.f32.mrf.mxu0
        %v455 = vpop.f32.mrf.mxu0
        %v456 = vadd.f32 %v348, %v455
        %v457 = vpop.f32.mrf.mxu0
        %458 = vdwg.mxu0
        %v459 = vmax.f32 %v445, 0.0
        %v460 = vmax.f32 %v448, 0.0
        %v461 = vmax.f32 %v453, 0.0
        %v462 = vmax.f32 %v456, 0.0
        %463 = vst [vmem:[#allocation2] sm:$0xff] %v459
        %464 = vst [vmem:[#allocation2 + $0x8] sm:$0xff] %v460
        %465 = vst [vmem:[#allocation2 + $0x10] sm:$0xff] %v461
        %466 = vst [vmem:[#allocation2 + $0x18] sm:$0xff] %v462
        %v467 = vld [vmem:[#allocation2] ss:$4 sm:$0xff]
        %s468 = scalar_lea.vmem [#allocation2], 1
        %v469 = vld [vmem:[%s468] ss:$4 sm:$0xff]
        %v470 = vadd.f32 %v467, %v469
        %s471 = scalar_lea.vmem [#allocation2], 2
        %v472 = vld [vmem:[%s471] ss:$4 sm:$0xff]
        %v473 = vadd.f32 %v470, %v472
        %s474 = scalar_lea.vmem [#allocation2], 3
        %v475 = vld [vmem:[%s474] ss:$4 sm:$0xff]
        %v476 = vadd.f32 %v473, %v475
        %v477 = vmul.f32 %v476, 0.25
        %v478 = vpack.c.bf16 %v477, %v477
        %v479 = vld [vmem:[%s3] sm:$0xf]
        %v480 = vld [vmem:[%s3 + $0x4] sm:$0xf]
        %v481 = vld [vmem:[%s3 + $0x8] sm:$0xf]
        %v482 = vld [vmem:[%s3 + $0xc] sm:$0xf]
        %v483 = vld [vmem:[%s3 + $0x10] sm:$0xf]
        %v484 = vld [vmem:[%s3 + $0x14] sm:$0xf]
        %v485 = vld [vmem:[%s3 + $0x18] sm:$0xf]
        %v486 = vld [vmem:[%s3 + $0x1c] sm:$0xf]
        %v487 = vld [vmem:[%s3 + $0x20] sm:$0xf]
        %v488 = vld [vmem:[%s3 + $0x24] sm:$0xf]
        %v489 = vld [vmem:[%s3 + $0x28] sm:$0xf]
        %v490 = vld [vmem:[%s3 + $0x2c] sm:$0xf]
        %v491 = vld [vmem:[%s3 + $0x30] sm:$0xf]
        %v492 = vld [vmem:[%s3 + $0x34] sm:$0xf]
        %v493 = vld [vmem:[%s3 + $0x38] sm:$0xf]
        %v494 = vld [vmem:[%s3 + $0x3c] sm:$0xf]
        %v495 = vld [vmem:[%s4] sm:$0x1]
        %v497 = vlaneseq
        %v498 = vshrl.u32 %v497, 7
        %v499 = vsub.s32 0, %v498
        %v500 = vrot.slane %v495, %v499
        %v518 = vunpack.c.l.b16 %v479
        %v519 = vunpack.c.l.b16 %v480
        %v520 = vunpack.c.l.b16 %v481
        %v521 = vunpack.c.l.b16 %v482
        %v522 = vunpack.c.l.b16 %v483
        %v523 = vunpack.c.l.b16 %v484
        %v524 = vunpack.c.l.b16 %v485
        %v525 = vunpack.c.l.b16 %v486
        %v526 = vunpack.c.l.b16 %v487
        %v527 = vunpack.c.l.b16 %v488
        %v528 = vunpack.c.l.b16 %v489
        %v529 = vunpack.c.l.b16 %v490
        %v530 = vunpack.c.l.b16 %v491
        %v531 = vunpack.c.l.b16 %v492
        %v532 = vunpack.c.l.b16 %v493
        %v533 = vunpack.c.l.b16 %v494
        %v534 = vpack.c.b16 %v519, %v518
        %v535 = vpack.c.b16 %v521, %v520
        %v536 = vpack.c.b16 %v523, %v522
        %v537 = vpack.c.b16 %v525, %v524
        %v538 = vpack.c.b16 %v527, %v526
        %v539 = vpack.c.b16 %v529, %v528
        %v540 = vpack.c.b16 %v531, %v530
        %v541 = vpack.c.b16 %v533, %v532
        %550 = vmatprep.subr.bf16.mxu0 0
        %551 = vmatpush1.bf16.msra.mxu0 %v541
        %552 = vmatprep.subr.bf16.mxu0 0
        %553 = vmatpush1.bf16.msra.mxu0 %v540
        %554 = vmatprep.subr.bf16.mxu0 0
        %555 = vmatpush1.bf16.msra.mxu0 %v539
        %556 = vmatprep.subr.bf16.mxu0 0
        %557 = vmatpush1.bf16.msra.mxu0 %v538
        %558 = vmatprep.subr.bf16.mxu0 0
        %559 = vmatpush1.bf16.msra.mxu0 %v537
        %560 = vmatprep.subr.bf16.mxu0 0
        %561 = vmatpush1.bf16.msra.mxu0 %v536
        %562 = vmatprep.subr.bf16.mxu0 0
        %563 = vmatpush1.bf16.msra.mxu0 %v535
        %564 = vmatprep.subr.bf16.mxu0 0
        %565 = vmatpush1.bf16.msra.mxu0 %v534
        %566 = vmatprep.subr.bf16.mxu0 0
        %567 = vmatpush2.bf16.msra.mxu0 0
        %568 = vmatprep.subr.bf16.mxu0 0
        %569 = vmatpush2.bf16.msra.mxu0 0
        %570 = vmatprep.subr.bf16.mxu0 0
        %571 = vmatpush2.bf16.msra.mxu0 0
        %572 = vmatprep.subr.bf16.mxu0 0
        %573 = vmatpush2.bf16.msra.mxu0 0
        %574 = vmatprep.subr.bf16.mxu0 0
        %575 = vmatpush2.bf16.msra.mxu0 0
        %576 = vmatprep.subr.bf16.mxu0 0
        %577 = vmatpush2.bf16.msra.mxu0 0
        %578 = vmatprep.subr.bf16.mxu0 0
        %579 = vmatpush2.bf16.msra.mxu0 0
        %580 = vmatprep.subr.bf16.mxu0 0
        %581 = vmatpush2.bf16.msra.mxu0 0
        %582 = vmatprep.mubr.bf16.mxu0 0
        %583 = vmatmul.mubr.bf16.gmra.mxu0 %v478
        %v584 = vpop.f32.mrf.mxu0
        %v585 = vadd.f32 %v500, %v584
        %v586 = vpop.f32.mrf.mxu0
        %v587 = vpop.f32.mrf.mxu0
        %v588 = vpop.f32.mrf.mxu0
        %589 = vdwg.mxu0
        %v590 = vmax.f32 %v585, 0.0
        %v591 = vpack.c.bf16 %v590, %v590
        %v592 = vld [vmem:[#allocation3] sm:$0xf]
        %v593 = vld [vmem:[#allocation3 + $0x4] sm:$0xf]
        %v594 = vld [vmem:[#allocation3 + $0x8] sm:$0xf]
        %v595 = vld [vmem:[#allocation3 + $0xc] sm:$0xf]
        %v596 = vld [vmem:[#allocation3 + $0x10] sm:$0xf]
        %v597 = vld [vmem:[#allocation3 + $0x14] sm:$0xf]
        %v598 = vld [vmem:[#allocation3 + $0x18] sm:$0xf]
        %v599 = vld [vmem:[#allocation3 + $0x1c] sm:$0xf]
        %v600 = vld [vmem:[#allocation3 + $0x20] sm:$0xf]
        %v601 = vld [vmem:[#allocation3 + $0x24] sm:$0xf]
        %v602 = vld [vmem:[#allocation3 + $0x28] sm:$0xf]
        %v603 = vld [vmem:[#allocation3 + $0x2c] sm:$0xf]
        %v604 = vld [vmem:[#allocation3 + $0x30] sm:$0xf]
        %v605 = vld [vmem:[#allocation3 + $0x34] sm:$0xf]
        %v606 = vld [vmem:[#allocation3 + $0x38] sm:$0xf]
        %v607 = vld [vmem:[#allocation3 + $0x3c] sm:$0xf]
        %v608 = vld [vmem:[%s6] sm:$0x1]
        %v610 = vlaneseq
        %v611 = vshrl.u32 %v610, 7
        %v612 = vsub.s32 0, %v611
        %v613 = vrot.slane %v608, %v612
        %v631 = vunpack.c.l.b16 %v592
        %v632 = vunpack.c.l.b16 %v593
        %v633 = vunpack.c.l.b16 %v594
        %v634 = vunpack.c.l.b16 %v595
        %v635 = vunpack.c.l.b16 %v596
        %v636 = vunpack.c.l.b16 %v597
        %v637 = vunpack.c.l.b16 %v598
        %v638 = vunpack.c.l.b16 %v599
        %v639 = vunpack.c.l.b16 %v600
        %v640 = vunpack.c.l.b16 %v601
        %v641 = vunpack.c.l.b16 %v602
        %v642 = vunpack.c.l.b16 %v603
        %v643 = vunpack.c.l.b16 %v604
        %v644 = vunpack.c.l.b16 %v605
        %v645 = vunpack.c.l.b16 %v606
        %v646 = vunpack.c.l.b16 %v607
        %v647 = vpack.c.b16 %v632, %v631
        %v648 = vpack.c.b16 %v634, %v633
        %v649 = vpack.c.b16 %v636, %v635
        %v650 = vpack.c.b16 %v638, %v637
        %v651 = vpack.c.b16 %v640, %v639
        %v652 = vpack.c.b16 %v642, %v641
        %v653 = vpack.c.b16 %v644, %v643
        %v654 = vpack.c.b16 %v646, %v645
        %663 = vmatprep.subr.bf16.mxu0 0
        %664 = vmatpush1.bf16.msra.mxu0 %v654
        %665 = vmatprep.subr.bf16.mxu0 0
        %666 = vmatpush1.bf16.msra.mxu0 %v653
        %667 = vmatprep.subr.bf16.mxu0 0
        %668 = vmatpush1.bf16.msra.mxu0 %v652
        %669 = vmatprep.subr.bf16.mxu0 0
        %670 = vmatpush1.bf16.msra.mxu0 %v651
        %671 = vmatprep.subr.bf16.mxu0 0
        %672 = vmatpush1.bf16.msra.mxu0 %v650
        %673 = vmatprep.subr.bf16.mxu0 0
        %674 = vmatpush1.bf16.msra.mxu0 %v649
        %675 = vmatprep.subr.bf16.mxu0 0
        %676 = vmatpush1.bf16.msra.mxu0 %v648
        %677 = vmatprep.subr.bf16.mxu0 0
        %678 = vmatpush1.bf16.msra.mxu0 %v647
        %679 = vmatprep.subr.bf16.mxu0 0
        %680 = vmatpush2.bf16.msra.mxu0 0
        %681 = vmatprep.subr.bf16.mxu0 0
        %682 = vmatpush2.bf16.msra.mxu0 0
        %683 = vmatprep.subr.bf16.mxu0 0
        %684 = vmatpush2.bf16.msra.mxu0 0
        %685 = vmatprep.subr.bf16.mxu0 0
        %686 = vmatpush2.bf16.msra.mxu0 0
        %687 = vmatprep.subr.bf16.mxu0 0
        %688 = vmatpush2.bf16.msra.mxu0 0
        %689 = vmatprep.subr.bf16.mxu0 0
        %690 = vmatpush2.bf16.msra.mxu0 0
        %691 = vmatprep.subr.bf16.mxu0 0
        %692 = vmatpush2.bf16.msra.mxu0 0
        %693 = vmatprep.subr.bf16.mxu0 0
        %694 = vmatpush2.bf16.msra.mxu0 0
        %695 = vmatprep.mubr.bf16.mxu0 0
        %696 = vmatmul.mubr.bf16.gmra.mxu0 %v591
        %v697 = vpop.f32.mrf.mxu0
        %v698 = vadd.f32 %v613, %v697
        %v699 = vpop.f32.mrf.mxu0
        %v700 = vpop.f32.mrf.mxu0
        %v701 = vpop.f32.mrf.mxu0
        %702 = vdwg.mxu0
        %703 = vst [vmem:[%s311] sm:$0xff] %v698
        %s704 = sand.u32 %s198, 1
        %s705 = scalar_lea.sflag [#allocation5], %s704
        %s706 = sand.u32 %s198, 1
        %s707 = smul.addr %s706, 8
        %s708 = scalar_lea.vmem [#allocation6], %s707
        // Predicated region
        $region53: #{linear_pool_connector_forward.1} parent=47 // pred_check
          %p709 = pneg %p208
        $region54: #{linear_pool_connector_forward.1} parent=47 // pred_check_branch
          %711 = sbr.rel (%p709) target = $region56
        $region55: #{linear_pool_connector_forward.1} parent=47 // pred_region
          %s713 = ssub.s32 128, 128
          %714 = vsyncadd %s705, %s713
          %s715 = sadd.s32 %s27, %s26
          %s716 = smul.addr %s715, 128
          %s717 = scalar_lea.hbm %s7, %s716
          %s719 = sshll.u32 %s708, 4
          %s720 = int_to_ptr.vmem [resolvable:$true] %s719
          %722 = dma.vmem_to_hbm [thread:$0]  %s720, 128, %s717, %s705
        $region56: #{linear_pool_connector_forward.1} parent=47 // pred_fallthru
          _
      $region48: #{linear_pool_connector_forward.1} parent=5 // pred_fallthru
        _
      %p723 = scmp.le.s32.totalorder 2, %s17
      // Predicated region
      $region57: #{linear_pool_connector_forward.1} parent=5 // pred_check
        %p724 = pneg %p723
      $region58: #{linear_pool_connector_forward.1} parent=5 // pred_check_branch
        %726 = sbr.rel (%p724) target = $region60
      $region59: #{linear_pool_connector_forward.1} parent=5 // pred_region
        %s727 = ssub.s32 %s17, 2
        // Predicated region
        $region61: #{linear_pool_connector_forward.1} parent=59 // pred_check
          %p728 = pneg %p214
        $region62: #{linear_pool_connector_forward.1} parent=59 // pred_check_branch
          %730 = sbr.rel (%p728) target = $region64
        $region63: #{linear_pool_connector_forward.1} parent=59 // pred_region
          %s731 = sand.u32 %s199, 1
          %s732 = scalar_lea.sflag [#allocation5], %s731
          %s733 = sand.u32 %s199, 1
          %s734 = smul.addr %s733, 8
          %s735 = scalar_lea.vmem [#allocation6], %s734
          %736 = dma.done %s732, 128
        $region64: #{linear_pool_connector_forward.1} parent=59 // pred_fallthru
          _
      $region60: #{linear_pool_connector_forward.1} parent=5 // pred_fallthru
        _
    $region6: #{linear_pool_connector_forward.1} parent=1 // loop_footer
      %s21 = sadd.s32 1, %s17
    $region7: #{linear_pool_connector_forward.1} parent=1 // loop_footer_branch
      %16 = sbr.rel target = $region3
    $region8: #{linear_pool_connector_forward.1} parent=1 // loop_exit
      _
    %737 = vsyncpa [#allocation4], 1
    %s738 = scalar_lea.sflag [#allocation4], 1
    %739 = vsyncpa %s738, 1
    %740 = vsyncpa [#allocation5], 1
    %s741 = scalar_lea.sflag [#allocation5], 1
    %742 = vsyncpa %s741, 1

</llo_original>
